<compile_context>
chip_gen: v5e
topology: v5e:2x2
jax: 0.10.0
libtpu: 0.0.40
codegen_flags: <defaults>
</compile_context>

<pallas_src>
import functools
import numpy as np
import jax
import jax.numpy as jnp
from jax import lax
from jax.experimental import pallas as pl
from jax.experimental.pallas import tpu as pltpu

EPS = 1e-12
LANE = 128


def _round_up(x, m):
    return (x + m - 1) // m * m


# ---------------------------------------------------------------------------
# Kernel 1: power iteration + sigma + weight normalization (runs once, f32).
# ---------------------------------------------------------------------------
def _power_iter_kernel(power_iterations, w_ref, u_ref, v_ref,
                       wn_ref, un_ref, vn_ref):
    """w_ref: (O_pad, K) f32 (zero rows beyond O), u_ref: (1, O_pad), v_ref: (1, K)."""
    w = w_ref[...]
    u = u_ref[...]
    v = v_ref[...]
    for _ in range(power_iterations):
        # v = l2normalize(W^T u)
        v = jnp.dot(u, w, preferred_element_type=jnp.float32)            # (1, K)
        v = v / (jnp.sqrt(jnp.sum(v * v)) + EPS)
        # u = l2normalize(W v)
        u = lax.dot_general(v, w, (((1,), (1,)), ((), ())),
                            preferred_element_type=jnp.float32)          # (1, O_pad)
        u = u / (jnp.sqrt(jnp.sum(u * u)) + EPS)
    wv = lax.dot_general(v, w, (((1,), (1,)), ((), ())),
                         preferred_element_type=jnp.float32)             # (1, O_pad)
    sigma = jnp.sum(u * wv)
    wn_ref[...] = w / sigma            # exact divide: one-time, off hot path
    un_ref[...] = u
    vn_ref[...] = v


# ---------------------------------------------------------------------------
# Kernel 2: tiled conv-as-matmul:  y_tile = patches_tile @ w_n^T + b
#           bf16 operands, f32 accumulation (MXU), lane-dense f32 output.
# ---------------------------------------------------------------------------
def _conv_mm_kernel(p_ref, wt_ref, b_ref, y_ref):
    y_ref[...] = jnp.dot(p_ref[...], wt_ref[...],
                         preferred_element_type=jnp.float32) + b_ref[...]


# ---------------------------------------------------------------------------
# Wrapper: SpectralNorm(nn.Conv2d(C, O, KHxKW, stride=1, padding=padding))
# ---------------------------------------------------------------------------
def spectral_norm_conv2d(x, w_bar, bias, u, v, *, padding=1,
                         power_iterations=1, tile_m=256):
    N, C, H, W = x.shape
    O, Ci, KH, KW = w_bar.shape
    assert Ci == C, "channel mismatch"
    Ho = H + 2 * padding - KH + 1            # stride 1 (matches the module)
    Wo = W + 2 * padding - KW + 1
    K = C * KH * KW
    NHW = N * Ho * Wo

    O_pad = _round_up(O, LANE)               # lane-dense output channels
    NHW_pad = _round_up(NHW, tile_m)

    # ---- one-shot spectral-norm kernel (all f32; zero-padded O is inert) ----
    w_mat = jnp.zeros((O_pad, K), jnp.float32).at[:O].set(
        w_bar.reshape(O, K).astype(jnp.float32))
    u2 = jnp.zeros((1, O_pad), jnp.float32).at[0, :O].set(u.astype(jnp.float32))
    v2 = v.reshape(1, K).astype(jnp.float32)

    full = lambda shape: pl.BlockSpec(shape, lambda i: (0, 0))
    w_n, u_new, v_new = pl.pallas_call(
        functools.partial(_power_iter_kernel, power_iterations),
        grid=(1,),
        in_specs=[full((O_pad, K)), full((1, O_pad)), full((1, K))],
        out_specs=(full((O_pad, K)), full((1, O_pad)), full((1, K))),
        out_shape=(jax.ShapeDtypeStruct((O_pad, K), jnp.float32),
                   jax.ShapeDtypeStruct((1, O_pad), jnp.float32),
                   jax.ShapeDtypeStruct((1, K), jnp.float32)),
        compiler_params=pltpu.CompilerParams(
            dimension_semantics=("arbitrary",)),
    )(w_mat, u2, v2)

    # Pre-transpose the (small) normalized weight once -> plain (M,K)@(K,N).
    w_n_t = w_n.T.astype(jnp.bfloat16)                              # (K, O_pad)
    b2 = jnp.zeros((1, O_pad), jnp.float32).at[0, :O].set(bias.astype(jnp.float32))

    # ---- im2col (layout glue, bf16 to halve HBM traffic) ----
    # TODO(synk): replace im2col with in-kernel shifted matmuls over an NHWC
    # x block (halo reads) to avoid the KH*KW blow-up of x through HBM.
    xb = x.astype(jnp.bfloat16)
    xp = jnp.pad(xb, ((0, 0), (0, 0), (padding, padding), (padding, padding)))
    cols = [xp[:, :, kh:kh + Ho, kw:kw + Wo]
            for kh in range(KH) for kw in range(KW)]
    cols = jnp.stack(cols, axis=2)                                  # (N, C, KH*KW, Ho, Wo)
    patches = (cols.reshape(N, K, Ho * Wo)                          # (C, KH, KW) flat order
                   .transpose(0, 2, 1)
                   .reshape(NHW, K))
    patches = jnp.pad(patches, ((0, NHW_pad - NHW), (0, 0)))        # rows -> tile multiple

    grid_m = NHW_pad // tile_m
    cost = pl.CostEstimate(
        flops=2 * NHW_pad * K * O_pad,
        transcendentals=0,
        bytes_accessed=(patches.size * 2 + w_n_t.size * 2
                        + b2.size * 4 + NHW_pad * O_pad * 4))

    y = pl.pallas_call(
        _conv_mm_kernel,
        grid=(grid_m,),
        in_specs=[pl.BlockSpec((tile_m, K), lambda i: (i, 0)),      # patches (pipelined)
                  pl.BlockSpec((K, O_pad), lambda i: (0, 0)),       # weight (resident)
                  pl.BlockSpec((1, O_pad), lambda i: (0, 0))],      # bias   (resident)
        out_specs=pl.BlockSpec((tile_m, O_pad), lambda i: (i, 0)),
        out_shape=jax.ShapeDtypeStruct((NHW_pad, O_pad), jnp.float32),
        compiler_params=pltpu.CompilerParams(
            dimension_semantics=("parallel",),
            vmem_limit_bytes=48 * 1024 * 1024),
        cost_estimate=cost,
    )(patches, w_n_t, b2)

    y_nchw = y[:NHW, :O].reshape(N, Ho, Wo, O).transpose(0, 3, 1, 2)
    return y_nchw, u_new[0, :O], v_new[0]


# ----------------------------- pure-JAX reference -----------------------------
def l2normalize(x, eps=EPS):
    return x / (jnp.linalg.norm(x) + eps)


def ref_forward(x, w_bar, bias, u, v, padding=1, power_iterations=1):
    O = w_bar.shape[0]
    w_mat = w_bar.reshape(O, -1)
    for _ in range(power_iterations):
        v = l2normalize(w_mat.T @ u)
        u = l2normalize(w_mat @ v)
    sigma = u @ (w_mat @ v)
    w_n = w_bar / sigma
    y = lax.conv_general_dilated(x, w_n, window_strides=(1, 1),
                                 padding=((padding, padding), (padding, padding)),
                                 dimension_numbers=('NCHW', 'OIHW', 'NCHW'))
    return y + bias[None, :, None, None], u, v


if __name__ == "__main__":
    key = jax.random.PRNGKey(0)
    k1, k2, k3, k4, k5 = jax.random.split(key, 5)

    N, C, H, W = 2, 4, 16, 16
    O, KH, KW = 8, 3, 3
    Kdim = C * KH * KW

    x = jax.random.normal(k1, (N, C, H, W), jnp.float32)
    bound = 1.0 / np.sqrt(Kdim)                          # Conv2d default-style init
    w_bar = jax.random.uniform(k2, (O, C, KH, KW), jnp.float32, -bound, bound)
    bias = jax.random.uniform(k3, (O,), jnp.float32, -bound, bound)
    u0 = l2normalize(jax.random.normal(k4, (O,), jnp.float32))       # _make_params
    v0 = l2normalize(jax.random.normal(k5, (Kdim,), jnp.float32))

    y, u_new, v_new = jax.jit(spectral_norm_conv2d)(x, w_bar, bias, u0, v0)
    jax.block_until_ready(y)

    y_ref, u_ref, v_ref = ref_forward(x, w_bar, bias, u0, v0)
    # conv runs on the MXU in bf16 (f32 accumulation) -> compare with bf16-level
    # tolerance; power iteration / u / v stay in f32 -> tight tolerance.
    assert np.allclose(np.asarray(y), np.asarray(y_ref), rtol=2e-2, atol=2e-2)
    assert np.allclose(np.asarray(u_new), np.asarray(u_ref), rtol=1e-4, atol=1e-4)
    assert np.allclose(np.asarray(v_new), np.asarray(v_ref), rtol=1e-4, atol=1e-4)
    print("KERNEL_OK")
</pallas_src>

<mosaic_0001>
module attributes {stable_mosaic.version = 11 : i64} {
  func.func @_power_iter_kernel(%arg0: i32, %arg1: memref<128x36xf32, #tpu.memory_space<vmem>>, %arg2: memref<1x128xf32, #tpu.memory_space<vmem>>, %arg3: memref<1x36xf32, #tpu.memory_space<vmem>>, %arg4: memref<128x36xf32, #tpu.memory_space<vmem>>, %arg5: memref<1x128xf32, #tpu.memory_space<vmem>>, %arg6: memref<1x36xf32, #tpu.memory_space<vmem>>) attributes {dimension_semantics = [#tpu.dimension_semantics<arbitrary>], iteration_bounds = array<i64: 1>, scalar_prefetch = 0 : i64, scratch_operands = 0 : i64, tpu.core_type = #tpu.core_type<tc>, window_params = [{pipeline_mode = #tpu.pipeline_mode<synchronous>, transform_indices = @transform_0, window_bounds = array<i64: 128, 36>}, {pipeline_mode = #tpu.pipeline_mode<synchronous>, transform_indices = @transform_1, window_bounds = array<i64: 1, 128>}, {pipeline_mode = #tpu.pipeline_mode<synchronous>, transform_indices = @transform_2, window_bounds = array<i64: 1, 36>}, {pipeline_mode = #tpu.pipeline_mode<synchronous>, transform_indices = @transform_3, window_bounds = array<i64: 128, 36>}, {pipeline_mode = #tpu.pipeline_mode<synchronous>, transform_indices = @transform_4, window_bounds = array<i64: 1, 128>}, {pipeline_mode = #tpu.pipeline_mode<synchronous>, transform_indices = @transform_5, window_bounds = array<i64: 1, 36>}]} {
    %c0 = arith.constant 0 : index
    %c0_0 = arith.constant 0 : index
    %0 = vector.load %arg1[%c0, %c0_0] : memref<128x36xf32, #tpu.memory_space<vmem>>, vector<128x36xf32>
    %c0_1 = arith.constant 0 : index
    %c0_2 = arith.constant 0 : index
    %1 = vector.load %arg2[%c0_1, %c0_2] : memref<1x128xf32, #tpu.memory_space<vmem>>, vector<1x128xf32>
    %cst = arith.constant dense<0.000000e+00> : vector<1x36xf32>
    %2 = tpu.matmul %1, %0, %cst {dimension_numbers = #tpu.dot_dimension_numbers<[1], [0], [0], [1], [0, 0, 1, 1], [], []>} : vector<1x128xf32>, vector<128x36xf32>, vector<1x36xf32> -> vector<1x36xf32>
    %3 = arith.mulf %2, %2 : vector<1x36xf32>
    %4 = vector.shape_cast %3 : vector<1x36xf32> to vector<1x1x36xf32>
    %cst_3 = arith.constant dense<0.000000e+00> : vector<1xf32>
    %5 = vector.multi_reduction <add>, %4, %cst_3 [1, 2] : vector<1x1x36xf32> to vector<1xf32>
    %6 = vector.shape_cast %5 : vector<1xf32> to vector<1x1x1xf32>
    %7 = vector.extract %6[0, 0, 0] : f32 from vector<1x1x1xf32>
    %8 = math.sqrt %7 : f32
    %cst_4 = arith.constant 9.99999996E-13 : f32
    %9 = arith.addf %8, %cst_4 : f32
    %10 = vector.broadcast %9 : f32 to vector<1x36xf32>
    %11 = arith.divf %2, %10 : vector<1x36xf32>
    %cst_5 = arith.constant dense<0.000000e+00> : vector<1x128xf32>
    %12 = tpu.matmul %11, %0, %cst_5 {dimension_numbers = #tpu.dot_dimension_numbers<[1], [1], [0], [0], [0, 0, 1, 0], [], []>} : vector<1x36xf32>, vector<128x36xf32>, vector<1x128xf32> -> vector<1x128xf32>
    %13 = arith.mulf %12, %12 : vector<1x128xf32>
    %14 = vector.shape_cast %13 : vector<1x128xf32> to vector<1x1x128xf32>
    %cst_6 = arith.constant dense<0.000000e+00> : vector<1xf32>
    %15 = vector.multi_reduction <add>, %14, %cst_6 [1, 2] : vector<1x1x128xf32> to vector<1xf32>
    %16 = vector.shape_cast %15 : vector<1xf32> to vector<1x1x1xf32>
    %17 = vector.extract %16[0, 0, 0] : f32 from vector<1x1x1xf32>
    %18 = math.sqrt %17 : f32
    %cst_7 = arith.constant 9.99999996E-13 : f32
    %19 = arith.addf %18, %cst_7 : f32
    %20 = vector.broadcast %19 : f32 to vector<1x128xf32>
    %21 = arith.divf %12, %20 : vector<1x128xf32>
    %cst_8 = arith.constant dense<0.000000e+00> : vector<1x128xf32>
    %22 = tpu.matmul %11, %0, %cst_8 {dimension_numbers = #tpu.dot_dimension_numbers<[1], [1], [0], [0], [0, 0, 1, 0], [], []>} : vector<1x36xf32>, vector<128x36xf32>, vector<1x128xf32> -> vector<1x128xf32>
    %23 = arith.mulf %21, %22 : vector<1x128xf32>
    %24 = vector.shape_cast %23 : vector<1x128xf32> to vector<1x1x128xf32>
    %cst_9 = arith.constant dense<0.000000e+00> : vector<1xf32>
    %25 = vector.multi_reduction <add>, %24, %cst_9 [1, 2] : vector<1x1x128xf32> to vector<1xf32>
    %26 = vector.shape_cast %25 : vector<1xf32> to vector<1x1x1xf32>
    %27 = vector.extract %26[0, 0, 0] : f32 from vector<1x1x1xf32>
    %28 = vector.broadcast %27 : f32 to vector<128x36xf32>
    %29 = arith.divf %0, %28 : vector<128x36xf32>
    %c0_10 = arith.constant 0 : index
    %c0_11 = arith.constant 0 : index
    %30 = vector.load %arg4[%c0_10, %c0_11] : memref<128x36xf32, #tpu.memory_space<vmem>>, vector<128x36xf32>
    tpu.vector_store %arg4[%c0_10, %c0_11], %29 {strides = array<i32>} : memref<128x36xf32, #tpu.memory_space<vmem>>, vector<128x36xf32>,
    %c0_12 = arith.constant 0 : index
    %c0_13 = arith.constant 0 : index
    %31 = vector.load %arg5[%c0_12, %c0_13] : memref<1x128xf32, #tpu.memory_space<vmem>>, vector<1x128xf32>
    tpu.vector_store %arg5[%c0_12, %c0_13], %21 {strides = array<i32>} : memref<1x128xf32, #tpu.memory_space<vmem>>, vector<1x128xf32>,
    %c0_14 = arith.constant 0 : index
    %c0_15 = arith.constant 0 : index
    %32 = vector.load %arg6[%c0_14, %c0_15] : memref<1x36xf32, #tpu.memory_space<vmem>>, vector<1x36xf32>
    tpu.vector_store %arg6[%c0_14, %c0_15], %11 {strides = array<i32>} : memref<1x36xf32, #tpu.memory_space<vmem>>, vector<1x36xf32>,
    return
  }
  func.func @transform_0(%arg0: i32) -> (i32, i32) {
    %c0_i32 = arith.constant 0 : i32
    %c0_i32_0 = arith.constant 0 : i32
    %c0_i32_1 = arith.constant 0 : i32
    return %c0_i32, %c0_i32_0 : i32, i32
  }
  func.func @transform_1(%arg0: i32) -> (i32, i32) {
    %c0_i32 = arith.constant 0 : i32
    %c0_i32_0 = arith.constant 0 : i32
    %c0_i32_1 = arith.constant 0 : i32
    return %c0_i32, %c0_i32_0 : i32, i32
  }
  func.func @transform_2(%arg0: i32) -> (i32, i32) {
    %c0_i32 = arith.constant 0 : i32
    %c0_i32_0 = arith.constant 0 : i32
    %c0_i32_1 = arith.constant 0 : i32
    return %c0_i32, %c0_i32_0 : i32, i32
  }
  func.func @transform_3(%arg0: i32) -> (i32, i32) {
    %c0_i32 = arith.constant 0 : i32
    %c0_i32_0 = arith.constant 0 : i32
    %c0_i32_1 = arith.constant 0 : i32
    return %c0_i32, %c0_i32_0 : i32, i32
  }
  func.func @transform_4(%arg0: i32) -> (i32, i32) {
    %c0_i32 = arith.constant 0 : i32
    %c0_i32_0 = arith.constant 0 : i32
    %c0_i32_1 = arith.constant 0 : i32
    return %c0_i32, %c0_i32_0 : i32, i32
  }
  func.func @transform_5(%arg0: i32) -> (i32, i32) {
    %c0_i32 = arith.constant 0 : i32
    %c0_i32_0 = arith.constant 0 : i32
    %c0_i32_1 = arith.constant 0 : i32
    return %c0_i32, %c0_i32_0 : i32, i32
  }
}

module attributes {stable_mosaic.version = 11 : i64} {
  func.func @_conv_mm_kernel(%arg0: i32, %arg1: memref<256x36xbf16, #tpu.memory_space<vmem>>, %arg2: memref<36x128xbf16, #tpu.memory_space<vmem>>, %arg3: memref<1x128xf32, #tpu.memory_space<vmem>>, %arg4: memref<256x128xf32, #tpu.memory_space<vmem>>) attributes {dimension_semantics = [#tpu.dimension_semantics<parallel>], iteration_bounds = array<i64: 2>, scalar_prefetch = 0 : i64, scratch_operands = 0 : i64, tpu.core_type = #tpu.core_type<tc>, window_params = [{transform_indices = @transform_0, window_bounds = array<i64: 256, 36>}, {pipeline_mode = #tpu.pipeline_mode<synchronous>, transform_indices = @transform_1, window_bounds = array<i64: 36, 128>}, {pipeline_mode = #tpu.pipeline_mode<synchronous>, transform_indices = @transform_2, window_bounds = array<i64: 1, 128>}, {transform_indices = @transform_3, window_bounds = array<i64: 256, 128>}]} {
    %c0 = arith.constant 0 : index
    %c0_0 = arith.constant 0 : index
    %0 = vector.load %arg1[%c0, %c0_0] : memref<256x36xbf16, #tpu.memory_space<vmem>>, vector<256x36xbf16>
    %c0_1 = arith.constant 0 : index
    %c0_2 = arith.constant 0 : index
    %1 = vector.load %arg2[%c0_1, %c0_2] : memref<36x128xbf16, #tpu.memory_space<vmem>>, vector<36x128xbf16>
    %cst = arith.constant dense<0.000000e+00> : vector<256x128xf32>
    %2 = tpu.matmul %0, %1, %cst {dimension_numbers = #tpu.dot_dimension_numbers<[1], [0], [0], [1], [0, 0, 1, 1], [], []>} : vector<256x36xbf16>, vector<36x128xbf16>, vector<256x128xf32> -> vector<256x128xf32>
    %c0_3 = arith.constant 0 : index
    %c0_4 = arith.constant 0 : index
    %3 = vector.load %arg3[%c0_3, %c0_4] : memref<1x128xf32, #tpu.memory_space<vmem>>, vector<1x128xf32>
    %4 = vector.broadcast %3 : vector<1x128xf32> to vector<256x128xf32>
    %5 = arith.addf %2, %4 : vector<256x128xf32>
    %c0_5 = arith.constant 0 : index
    %c0_6 = arith.constant 0 : index
    %6 = vector.load %arg4[%c0_5, %c0_6] : memref<256x128xf32, #tpu.memory_space<vmem>>, vector<256x128xf32>
    tpu.vector_store %arg4[%c0_5, %c0_6], %5 {strides = array<i32>} : memref<256x128xf32, #tpu.memory_space<vmem>>, vector<256x128xf32>,
    return
  }
  func.func @transform_0(%arg0: i32) -> (i32, i32) {
    %c0_i32 = arith.constant 0 : i32
    %c0_i32_0 = arith.constant 0 : i32
    return %arg0, %c0_i32 : i32, i32
  }
  func.func @transform_1(%arg0: i32) -> (i32, i32) {
    %c0_i32 = arith.constant 0 : i32
    %c0_i32_0 = arith.constant 0 : i32
    %c0_i32_1 = arith.constant 0 : i32
    return %c0_i32, %c0_i32_0 : i32, i32
  }
  func.func @transform_2(%arg0: i32) -> (i32, i32) {
    %c0_i32 = arith.constant 0 : i32
    %c0_i32_0 = arith.constant 0 : i32
    %c0_i32_1 = arith.constant 0 : i32
    return %c0_i32, %c0_i32_0 : i32, i32
  }
  func.func @transform_3(%arg0: i32) -> (i32, i32) {
    %c0_i32 = arith.constant 0 : i32
    %c0_i32_0 = arith.constant 0 : i32
    return %arg0, %c0_i32 : i32, i32
  }
}

</mosaic_0001>

<llo_original>
// kernel: spectral_norm_conv2d.2
$region0: #{spectral_norm_conv2d.2}
  #allocation0 [shape = 'u32[]', space=smem, size = 0x4, offset = 0x4, fixed_abs, tag = 'smem constant byte address 0x4 - core index']
  #allocation1 [shape = 'u32[72,128]{1,0:T(1,128)}', space=vmem, size = 0x9000, scoped, tag = 'internal scratch']
  %s0 = inlined_call_operand.vmem [shape: f32[128,36], index: 0, kind: input, shape index: {}]
  %s1 = inlined_call_operand.vmem [shape: f32[1,128], index: 1, kind: input, shape index: {}]
  %s2 = inlined_call_operand.vmem [shape: f32[1,36], index: 2, kind: input, shape index: {}]
  %s3 = inlined_call_operand.vmem [shape: f32[128,36], index: 3, kind: output, shape index: {0}]
  %s4 = inlined_call_operand.vmem [shape: f32[1,128], index: 4, kind: output, shape index: {1}]
  %s5 = inlined_call_operand.hbm [shape: f32[1,36], index: 5, kind: output, shape index: {2}]
  %6 = xla_tuple %s3, %s4, %s5
  %s7 = sld [smem:[#allocation0]]
  $region38: #{spectral_norm_conv2d.2} parent=0
    _
  %s9 = ssub.s32 1, %s7
  %s10 = scalar_select 0, %s9, %s7
  $region1: #{spectral_norm_conv2d.2} parent=0
    #allocation2 [shape = 'u8[512]{0}', space=vmem, size = 0x400, scoped, tag = 'output window, operand 2, single buffered']
    #allocation3 [shape = 's32[1]{0}', space=sflag, size = 0x4, scoped, tag = 'scoped memory for spectral_norm_conv2d.2']
    %11 = vsyncpa [#allocation3], 0
    // Predicated region
    $region2: #{spectral_norm_conv2d.2} parent=1 // pred_check
      _
    $region3: #{spectral_norm_conv2d.2} parent=1 // pred_check_branch
      %13 = sbr.rel (0) target = $region5
    $region4: #{spectral_norm_conv2d.2} parent=1 // pred_region
      _
    $region5: #{spectral_norm_conv2d.2} parent=1 // pred_fallthru
      _
    // Predicated region
    $region6: #{spectral_norm_conv2d.2} parent=1 // pred_check
      _
    $region7: #{spectral_norm_conv2d.2} parent=1 // pred_check_branch
      %15 = sbr.rel (0) target = $region9
    $region8: #{spectral_norm_conv2d.2} parent=1 // pred_region
      _
    $region9: #{spectral_norm_conv2d.2} parent=1 // pred_fallthru
      _
    // Predicated region
    $region10: #{spectral_norm_conv2d.2} parent=1 // pred_check
      _
    $region11: #{spectral_norm_conv2d.2} parent=1 // pred_check_branch
      %17 = sbr.rel (0) target = $region13
    $region12: #{spectral_norm_conv2d.2} parent=1 // pred_region
      _
    $region13: #{spectral_norm_conv2d.2} parent=1 // pred_fallthru
      _
    %v18 = vld [vmem:[%s0] sm:$0xff]
    %v19 = vld [vmem:[%s0 + $0x8] sm:$0xff]
    %v20 = vld [vmem:[%s0 + $0x10] sm:$0xff]
    %v21 = vld [vmem:[%s0 + $0x18] sm:$0xff]
    %v22 = vld [vmem:[%s0 + $0x20] sm:$0xff]
    %v23 = vld [vmem:[%s0 + $0x28] sm:$0xff]
    %v24 = vld [vmem:[%s0 + $0x30] sm:$0xff]
    %v25 = vld [vmem:[%s0 + $0x38] sm:$0xff]
    %v26 = vld [vmem:[%s0 + $0x40] sm:$0xff]
    %v27 = vld [vmem:[%s0 + $0x48] sm:$0xff]
    %v28 = vld [vmem:[%s0 + $0x50] sm:$0xff]
    %v29 = vld [vmem:[%s0 + $0x58] sm:$0xff]
    %v30 = vld [vmem:[%s0 + $0x60] sm:$0xff]
    %v31 = vld [vmem:[%s0 + $0x68] sm:$0xff]
    %v32 = vld [vmem:[%s0 + $0x70] sm:$0xff]
    %v33 = vld [vmem:[%s0 + $0x78] sm:$0xff]
    %v34 = vld [vmem:[%s1] sm:$0x1]
    %35 = vmatpush.msra.mxu0 %v33
    %36 = vmatpush.msra.mxu0 %v32
    %37 = vmatpush.msra.mxu0 %v31
    %38 = vmatpush.msra.mxu0 %v30
    %39 = vmatpush.msra.mxu0 %v29
    %40 = vmatpush.msra.mxu0 %v28
    %41 = vmatpush.msra.mxu0 %v27
    %42 = vmatpush.msra.mxu0 %v26
    %43 = vmatpush.msra.mxu0 %v25
    %44 = vmatpush.msra.mxu0 %v24
    %45 = vmatpush.msra.mxu0 %v23
    %46 = vmatpush.msra.mxu0 %v22
    %47 = vmatpush.msra.mxu0 %v21
    %48 = vmatpush.msra.mxu0 %v20
    %49 = vmatpush.msra.mxu0 %v19
    %50 = vmatpush.msra.mxu0 %v18
    %51 = vmatmul.f32.gmra.mxu0 %v34
    %v52 = vpop.f32.mrf.mxu0
    %v53 = vadd.f32 0.0, %v52
    %54 = vdwg.mxu0
    %v55 = vmul.f32 %v53, %v53
    %vm56 = vcmask 286720
    %v57 = vsel %vm56, %v55, 0.0
    %58 = vadd.xlane.f32.xlu0 %v57
    %v59 = vpop.xlane.xlu0 %58
    %v60 = vrot.slane %v59, 4
    %v61 = vadd.f32 %v59, %v60
    %v62 = vrot.slane %v61, 2
    %v63 = vadd.f32 %v61, %v62
    %v64 = vrot.slane %v63, 1
    %v65 = vadd.f32 %v63, %v64
    %s66 = vtos %v65
    %v67 = vstv %s66
    %v68 = vrsqrt.pop %v67
    %v69 = vmul.f32 %v68, %v67
    %v70 = vmul.f32 %v69, %v68
    %v71 = vmul.f32 0.5, %v70
    %v72 = vsub.f32 1.5, %v71
    %v73 = vmul.f32 %v68, %v72
    %v74 = vmul.f32 %v67, %v73
    %vm75 = vcmp.eq.f32.partialorder %v67, inf
    %v76 = vsel %vm75, %v67, %v74
    %vm77 = vcmp.eq.f32.partialorder %v67, 0.0
    %v78 = vand.u32 %v67, 2147483648
    %v79 = vsel %vm77, %v78, %v76
    %s80 = vtos %v79
    %s81 = sadd.f32 %s80, 1e-12
    %v82 = vstv %s81
    %v83 = vrcp.pop %v82
    %v84 = vmul.f32 %v82, %v83
    %v85 = vsub.f32 1.0, %v84
    %v86 = vmul.f32 %v83, %v85
    %v87 = vadd.f32 %v83, %v86
    %vm88 = vweird.f32 %v82
    %vm89 = vweird.f32 %v83
    %vm90 = vmor %vm88, %vm89
    %v91 = vsel %vm90, %v83, %v87
    %v92 = vand.u32 2147483647, %v82
    %vm93 = vcmp.eq.f32.partialorder %v92, 8.507059e+37
    %v94 = vand.u32 %v82, 2147483648
    %v95 = vor.u32 1.1754944e-38, %v94
    %v96 = vsel %vm93, %v95, %v91
    %v97 = vmul.f32 %v53, %v96
    %vm98 = vcmask 293888
    %v100 = vsel %vm98, %v97, 0
    %v103 = vsel %vm98, %v18, 0
    %v106 = vsel %vm98, %v19, 0
    %v109 = vsel %vm98, %v20, 0
    %v112 = vsel %vm98, %v21, 0
    %v115 = vsel %vm98, %v22, 0
    %v118 = vsel %vm98, %v23, 0
    %v121 = vsel %vm98, %v24, 0
    %v124 = vsel %vm98, %v25, 0
    %v127 = vsel %vm98, %v26, 0
    %v130 = vsel %vm98, %v27, 0
    %v133 = vsel %vm98, %v28, 0
    %v136 = vsel %vm98, %v29, 0
    %v139 = vsel %vm98, %v30, 0
    %v142 = vsel %vm98, %v31, 0
    %v145 = vsel %vm98, %v32, 0
    %v148 = vsel %vm98, %v33, 0
    %150 = vmatpush.xpose.msra.mxu0 %v148
    %151 = vmatpush.xpose.msra.mxu0 %v145
    %152 = vmatpush.xpose.msra.mxu0 %v142
    %153 = vmatpush.xpose.msra.mxu0 %v139
    %154 = vmatpush.xpose.msra.mxu0 %v136
    %155 = vmatpush.xpose.msra.mxu0 %v133
    %156 = vmatpush.xpose.msra.mxu0 %v130
    %157 = vmatpush.xpose.msra.mxu0 %v127
    %158 = vmatpush.xpose.msra.mxu0 %v124
    %159 = vmatpush.xpose.msra.mxu0 %v121
    %160 = vmatpush.xpose.msra.mxu0 %v118
    %161 = vmatpush.xpose.msra.mxu0 %v115
    %162 = vmatpush.xpose.msra.mxu0 %v112
    %163 = vmatpush.xpose.msra.mxu0 %v109
    %164 = vmatpush.xpose.msra.mxu0 %v106
    %165 = vmatpush.xpose.msra.mxu0 %v103
    %166 = vmatmul.f32.gmra.mxu0 %v100
    %v167 = vpop.f32.mrf.mxu0
    %v168 = vadd.f32 0.0, %v167
    %169 = vdwg.mxu0
    %v170 = vmul.f32 %v168, %v168
    %vm171 = vcmask 1040384
    %v172 = vsel %vm171, %v170, 0.0
    %173 = vadd.xlane.f32.xlu0 %v172
    %v174 = vpop.xlane.xlu0 %173
    %v175 = vrot.slane %v174, 4
    %v176 = vadd.f32 %v174, %v175
    %v177 = vrot.slane %v176, 2
    %v178 = vadd.f32 %v176, %v177
    %v179 = vrot.slane %v178, 1
    %v180 = vadd.f32 %v178, %v179
    %s181 = vtos %v180
    %v182 = vstv %s181
    %v183 = vrsqrt.pop %v182
    %v184 = vmul.f32 %v183, %v182
    %v185 = vmul.f32 %v184, %v183
    %v186 = vmul.f32 0.5, %v185
    %v187 = vsub.f32 1.5, %v186
    %v188 = vmul.f32 %v183, %v187
    %v189 = vmul.f32 %v182, %v188
    %vm190 = vcmp.eq.f32.partialorder %v182, inf
    %v191 = vsel %vm190, %v182, %v189
    %vm192 = vcmp.eq.f32.partialorder %v182, 0.0
    %v193 = vand.u32 %v182, 2147483648
    %v194 = vsel %vm192, %v193, %v191
    %s195 = vtos %v194
    %s196 = sadd.f32 %s195, 1e-12
    %v197 = vstv %s196
    %v198 = vrcp.pop %v197
    %v199 = vmul.f32 %v197, %v198
    %v200 = vsub.f32 1.0, %v199
    %v201 = vmul.f32 %v198, %v200
    %v202 = vadd.f32 %v198, %v201
    %vm203 = vweird.f32 %v197
    %vm204 = vweird.f32 %v198
    %vm205 = vmor %vm203, %vm204
    %v206 = vsel %vm205, %v198, %v202
    %v207 = vand.u32 2147483647, %v197
    %vm208 = vcmp.eq.f32.partialorder %v207, 8.507059e+37
    %v209 = vand.u32 %v197, 2147483648
    %v210 = vor.u32 1.1754944e-38, %v209
    %v211 = vsel %vm208, %v210, %v206
    %v212 = vmul.f32 %v168, %v211
    %v213 = vmul.f32 %v212, %v168
    %v214 = vsel %vm171, %v213, 0.0
    %215 = vadd.xlane.f32.xlu0 %v214
    %v216 = vpop.xlane.xlu0 %215
    %v217 = vrot.slane %v216, 4
    %v218 = vadd.f32 %v216, %v217
    %v219 = vrot.slane %v218, 2
    %v220 = vadd.f32 %v218, %v219
    %v221 = vrot.slane %v220, 1
    %v222 = vadd.f32 %v220, %v221
    %s223 = vtos %v222
    %v224 = vstv %s223
    %v225 = vrcp.pop %v224
    %v226 = vmul.f32 %v224, %v225
    %v227 = vsub.f32 1.0, %v226
    %v228 = vmul.f32 %v225, %v227
    %v229 = vadd.f32 %v225, %v228
    %vm230 = vweird.f32 %v224
    %vm231 = vweird.f32 %v225
    %vm232 = vmor %vm230, %vm231
    %v233 = vsel %vm232, %v225, %v229
    %v234 = vand.u32 2147483647, %v224
    %vm235 = vcmp.eq.f32.partialorder %v234, 8.507059e+37
    %v236 = vand.u32 %v224, 2147483648
    %v237 = vor.u32 1.1754944e-38, %v236
    %v238 = vsel %vm235, %v237, %v233
    %v239 = vmul.f32 %v18, %v238
    %v240 = vmul.f32 %v19, %v238
    %v241 = vmul.f32 %v20, %v238
    %v242 = vmul.f32 %v21, %v238
    %v243 = vmul.f32 %v22, %v238
    %v244 = vmul.f32 %v23, %v238
    %v245 = vmul.f32 %v24, %v238
    %v246 = vmul.f32 %v25, %v238
    %v247 = vmul.f32 %v26, %v238
    %v248 = vmul.f32 %v27, %v238
    %v249 = vmul.f32 %v28, %v238
    %v250 = vmul.f32 %v29, %v238
    %v251 = vmul.f32 %v30, %v238
    %v252 = vmul.f32 %v31, %v238
    %v253 = vmul.f32 %v32, %v238
    %v254 = vmul.f32 %v33, %v238
    %255 = vst.msk [vmem:[%s3] sm:$0xff] %vm98, %v239
    %256 = vst.msk [vmem:[%s3 + $0x8] sm:$0xff] %vm98, %v240
    %257 = vst.msk [vmem:[%s3 + $0x10] sm:$0xff] %vm98, %v241
    %258 = vst.msk [vmem:[%s3 + $0x18] sm:$0xff] %vm98, %v242
    %259 = vst.msk [vmem:[%s3 + $0x20] sm:$0xff] %vm98, %v243
    %260 = vst.msk [vmem:[%s3 + $0x28] sm:$0xff] %vm98, %v244
    %261 = vst.msk [vmem:[%s3 + $0x30] sm:$0xff] %vm98, %v245
    %262 = vst.msk [vmem:[%s3 + $0x38] sm:$0xff] %vm98, %v246
    %263 = vst.msk [vmem:[%s3 + $0x40] sm:$0xff] %vm98, %v247
    %264 = vst.msk [vmem:[%s3 + $0x48] sm:$0xff] %vm98, %v248
    %265 = vst.msk [vmem:[%s3 + $0x50] sm:$0xff] %vm98, %v249
    %266 = vst.msk [vmem:[%s3 + $0x58] sm:$0xff] %vm98, %v250
    %267 = vst.msk [vmem:[%s3 + $0x60] sm:$0xff] %vm98, %v251
    %268 = vst.msk [vmem:[%s3 + $0x68] sm:$0xff] %vm98, %v252
    %269 = vst.msk [vmem:[%s3 + $0x70] sm:$0xff] %vm98, %v253
    %270 = vst.msk [vmem:[%s3 + $0x78] sm:$0xff] %vm98, %v254
    %271 = vst [vmem:[%s4] sm:$0x1] %v212
    %272 = vst.msk [vmem:[#allocation2] sm:$0x1] %vm56, %v97
    // Predicated region
    $region14: #{spectral_norm_conv2d.2} parent=1 // pred_check
      _
    $region15: #{spectral_norm_conv2d.2} parent=1 // pred_check_branch
      %274 = sbr.rel (0) target = $region17
    $region16: #{spectral_norm_conv2d.2} parent=1 // pred_region
      _
    $region17: #{spectral_norm_conv2d.2} parent=1 // pred_fallthru
      _
    // Predicated region
    $region18: #{spectral_norm_conv2d.2} parent=1 // pred_check
      _
    $region19: #{spectral_norm_conv2d.2} parent=1 // pred_check_branch
      %276 = sbr.rel (0) target = $region21
    $region20: #{spectral_norm_conv2d.2} parent=1 // pred_region
      _
    $region21: #{spectral_norm_conv2d.2} parent=1 // pred_fallthru
      _
    // Predicated region
    $region22: #{spectral_norm_conv2d.2} parent=1 // pred_check
      _
    $region23: #{spectral_norm_conv2d.2} parent=1 // pred_check_branch
      %278 = sbr.rel (0) target = $region25
    $region24: #{spectral_norm_conv2d.2} parent=1 // pred_region
      %280 = vsyncadd [#allocation3], 0
      %s282 = sshll.u32 [#allocation2], 4
      %s283 = int_to_ptr.vmem [resolvable:$true] %s282
      %s284 = sshll.u32 %s5, 4
      %s285 = int_to_ptr.hbm [resolvable:$true] %s284
      %287 = dma.vmem_to_hbm [thread:$0]  %s283, 16, %s285, [#allocation3]
    $region25: #{spectral_norm_conv2d.2} parent=1 // pred_fallthru
      _
    // Predicated region
    $region26: #{spectral_norm_conv2d.2} parent=1 // pred_check
      _
    $region27: #{spectral_norm_conv2d.2} parent=1 // pred_check_branch
      %289 = sbr.rel (0) target = $region29
    $region28: #{spectral_norm_conv2d.2} parent=1 // pred_region
      _
    $region29: #{spectral_norm_conv2d.2} parent=1 // pred_fallthru
      _
    // Predicated region
    $region30: #{spectral_norm_conv2d.2} parent=1 // pred_check
      _
    $region31: #{spectral_norm_conv2d.2} parent=1 // pred_check_branch
      %291 = sbr.rel (0) target = $region33
    $region32: #{spectral_norm_conv2d.2} parent=1 // pred_region
      _
    $region33: #{spectral_norm_conv2d.2} parent=1 // pred_fallthru
      _
    // Predicated region
    $region34: #{spectral_norm_conv2d.2} parent=1 // pred_check
      _
    $region35: #{spectral_norm_conv2d.2} parent=1 // pred_check_branch
      %293 = sbr.rel (0) target = $region37
    $region36: #{spectral_norm_conv2d.2} parent=1 // pred_region
      %295 = dma.done [#allocation3], 16
    $region37: #{spectral_norm_conv2d.2} parent=1 // pred_fallthru
      _
    %296 = vsyncpa [#allocation3], 1

// kernel: spectral_norm_conv2d.3
$region0: #{spectral_norm_conv2d.3}
  #allocation0 [shape = 'u32[]', space=smem, size = 0x4, offset = 0x4, fixed_abs, tag = 'smem constant byte address 0x4 - core index']
  #allocation1 [shape = 'u32[72,128]{1,0:T(1,128)}', space=vmem, size = 0x9000, scoped, tag = 'internal scratch']
  %s0 = inlined_call_operand.vmem [shape: bf16[512,36], index: 0, kind: input, shape index: {}]
  %s1 = inlined_call_operand.vmem [shape: bf16[36,128], index: 1, kind: input, shape index: {}]
  %s2 = inlined_call_operand.vmem [shape: f32[1,128], index: 2, kind: input, shape index: {}]
  %s3 = inlined_call_operand.vmem [shape: f32[512,128], index: 3, kind: output, shape index: {}]
  %s4 = sld [smem:[#allocation0]]
  $region45: #{spectral_norm_conv2d.3} parent=0
    _
  %s6 = ssub.s32 1, %s4
  %s7 = scalar_select 0, %s6, %s4
  loop: start=0, step=1, limit=4
  $region2: #{spectral_norm_conv2d.3} parent=0 // loop_pre_header
    _
  $region3: #{spectral_norm_conv2d.3} parent=0 // loop_header
    %s9 = sphi 0, %s13
    %p10 = scmp.ge.s32.totalorder %s9, 4
    %s19 = sphi 0, %s21
    %s22 = sphi 0, %s19
    %s23 = sphi 0, %s22
    %s39 = sphi 0, %s23
    %s43 = sphi 0, %s43
    %s45 = sphi 0, %s43
    %s46 = sphi 0, %s45
    %s60 = sphi 0, %s46
    %s64 = sphi 0, %s64
    %s66 = sphi 0, %s64
    %s67 = sphi 0, %s66
    %s81 = sphi 0, %s67
    %s87 = sphi 0, %s89
    %s90 = sphi 0, %s87
    %s91 = sphi 0, %s90
    %s107 = sphi 0, %s91
  $region4: #{spectral_norm_conv2d.3} parent=0 // loop_header_branch
    %12 = sbr.rel (%p10) target = $region8
  $region5: #{spectral_norm_conv2d.3} parent=0 // loop_body
    %s14 = ssub.s32 %s9, 1
    %s15 = ssub.s32 %s9, 2
    %s16 = sadd.s32 %s9, 1
    %s17 = ssub.s32 %s9, %s16
    %p18 = scmp.eq.s32.totalorder %s17, 0
    %s20 = sadd.s32 %s19, 1
    %s21 = scalar_select %p18, %s19, %s20
    %p24 = pneg %p18
    %p25 = scmp.eq.s32.totalorder %s9, 1
    %p26 = por %p24, %p25
    %p27 = scmp.ne.s32.totalorder %s19, %s22
    %p28 = scmp.eq.s32.totalorder %s9, 0
    %p29 = por %p27, %p28
    %p30 = scmp.ne.s32.totalorder %s19, %s22
    %p31 = scmp.eq.s32.totalorder %s14, 1
    %p32 = por %p30, %p31
    %p33 = scmp.ne.s32.totalorder %s22, %s23
    %p34 = scmp.eq.s32.totalorder %s14, 0
    %p35 = por %p33, %p34
    %p36 = scmp.ne.s32.totalorder %s22, %s23
    %p37 = scmp.eq.s32.totalorder %s15, 1
    %p38 = por %p36, %p37
    %p40 = scmp.ne.s32.totalorder %s23, %s39
    %p41 = scmp.eq.s32.totalorder %s15, 0
    %p42 = por %p40, %p41
    %s44 = sadd.s32 %s43, 1
    %p47 = scmp.eq.s32.totalorder %s9, 1
    %p48 = scmp.ne.s32.totalorder %s43, %s45
    %p49 = scmp.eq.s32.totalorder %s9, 0
    %p50 = por %p48, %p49
    %p51 = scmp.ne.s32.totalorder %s43, %s45
    %p52 = scmp.eq.s32.totalorder %s14, 1
    %p53 = por %p51, %p52
    %p54 = scmp.ne.s32.totalorder %s45, %s46
    %p55 = scmp.eq.s32.totalorder %s14, 0
    %p56 = por %p54, %p55
    %p57 = scmp.ne.s32.totalorder %s45, %s46
    %p58 = scmp.eq.s32.totalorder %s15, 1
    %p59 = por %p57, %p58
    %p61 = scmp.ne.s32.totalorder %s46, %s60
    %p62 = scmp.eq.s32.totalorder %s15, 0
    %p63 = por %p61, %p62
    %s65 = sadd.s32 %s64, 1
    %p68 = scmp.eq.s32.totalorder %s9, 1
    %p69 = scmp.ne.s32.totalorder %s64, %s66
    %p70 = scmp.eq.s32.totalorder %s9, 0
    %p71 = por %p69, %p70
    %p72 = scmp.ne.s32.totalorder %s64, %s66
    %p73 = scmp.eq.s32.totalorder %s14, 1
    %p74 = por %p72, %p73
    %p75 = scmp.ne.s32.totalorder %s66, %s67
    %p76 = scmp.eq.s32.totalorder %s14, 0
    %p77 = por %p75, %p76
    %p78 = scmp.ne.s32.totalorder %s66, %s67
    %p79 = scmp.eq.s32.totalorder %s15, 1
    %p80 = por %p78, %p79
    %p82 = scmp.ne.s32.totalorder %s67, %s81
    %p83 = scmp.eq.s32.totalorder %s15, 0
    %p84 = por %p82, %p83
    %s85 = ssub.s32 %s9, %s16
    %p86 = scmp.eq.s32.totalorder %s85, 0
    %s88 = sadd.s32 %s87, 1
    %s89 = scalar_select %p86, %s87, %s88
    %p92 = pneg %p86
    %p93 = scmp.eq.s32.totalorder %s9, 1
    %p94 = por %p92, %p93
    %p95 = scmp.ne.s32.totalorder %s87, %s90
    %p96 = scmp.eq.s32.totalorder %s9, 0
    %p97 = por %p95, %p96
    %p98 = scmp.ne.s32.totalorder %s87, %s90
    %p99 = scmp.eq.s32.totalorder %s14, 1
    %p100 = por %p98, %p99
    %p101 = scmp.ne.s32.totalorder %s90, %s91
    %p102 = scmp.eq.s32.totalorder %s14, 0
    %p103 = por %p101, %p102
    %p104 = scmp.ne.s32.totalorder %s90, %s91
    %p105 = scmp.eq.s32.totalorder %s15, 1
    %p106 = por %p104, %p105
    %p108 = scmp.ne.s32.totalorder %s91, %s107
    %p109 = scmp.eq.s32.totalorder %s15, 0
    %p110 = por %p108, %p109
    %p111 = scmp.le.s32.totalorder 1, %s9
    %p112 = scmp.lt.s32.totalorder %s9, 3
    %p113 = pnand %p111, %p112
    %p114 = pneg %p113
    // Predicated region
    $region9: #{spectral_norm_conv2d.3} parent=5 // pred_check
      _
    $region10: #{spectral_norm_conv2d.3} parent=5 // pred_check_branch
      %116 = sbr.rel (%p113) target = $region12
    $region11: #{spectral_norm_conv2d.3} parent=5 // pred_region
      %s117 = ssub.s32 %s9, 1
      // Predicated region
      $region13: #{spectral_norm_conv2d.3} parent=11 // pred_check
        %p118 = pneg %p56
      $region14: #{spectral_norm_conv2d.3} parent=11 // pred_check_branch
        %120 = sbr.rel (%p118) target = $region16
      $region15: #{spectral_norm_conv2d.3} parent=11 // pred_region
        _
      $region16: #{spectral_norm_conv2d.3} parent=11 // pred_fallthru
        _
      // Predicated region
      $region17: #{spectral_norm_conv2d.3} parent=11 // pred_check
        %p121 = pneg %p77
      $region18: #{spectral_norm_conv2d.3} parent=11 // pred_check_branch
        %123 = sbr.rel (%p121) target = $region20
      $region19: #{spectral_norm_conv2d.3} parent=11 // pred_region
        _
      $region20: #{spectral_norm_conv2d.3} parent=11 // pred_fallthru
        _
    $region12: #{spectral_norm_conv2d.3} parent=5 // pred_fallthru
      _
    %p124 = scmp.lt.s32.totalorder %s9, 2
    // Predicated region
    $region21: #{spectral_norm_conv2d.3} parent=5 // pred_check
      %p125 = pneg %p124
    $region22: #{spectral_norm_conv2d.3} parent=5 // pred_check_branch
      %127 = sbr.rel (%p125) target = $region24
    $region23: #{spectral_norm_conv2d.3} parent=5 // pred_region
      // Predicated region
      $region25: #{spectral_norm_conv2d.3} parent=23 // pred_check
        %p128 = pneg %p29
      $region26: #{spectral_norm_conv2d.3} parent=23 // pred_check_branch
        %130 = sbr.rel (%p128) target = $region28
      $region27: #{spectral_norm_conv2d.3} parent=23 // pred_region
        %s131 = smul.u32 32, %s9
        %p132 = scmp.lt.s32.totalorder %s131, 63
        %s133 = scalar_select %p132, %s131, 63
        %s134 = smul.addr %s133, 4
        %s135 = scalar_lea.vmem %s0, %s134
        %s136 = smul.u32 32, %s9
      $region28: #{spectral_norm_conv2d.3} parent=23 // pred_fallthru
        _
    $region24: #{spectral_norm_conv2d.3} parent=5 // pred_fallthru
      _
    %p137 = scmp.le.s32.totalorder 1, %s9
    %p138 = scmp.lt.s32.totalorder %s9, 3
    %p139 = pnand %p137, %p138
    %p140 = pneg %p139
    // Predicated region
    $region29: #{spectral_norm_conv2d.3} parent=5 // pred_check
      _
    $region30: #{spectral_norm_conv2d.3} parent=5 // pred_check_branch
      %142 = sbr.rel (%p139) target = $region32
    $region31: #{spectral_norm_conv2d.3} parent=5 // pred_region
      %s143 = ssub.s32 %s9, 1
      %s144 = smul.u32 32, %s14
      %p145 = scmp.lt.s32.totalorder %s144, 63
      %s146 = scalar_select %p145, %s144, 63
      %s147 = smul.addr %s146, 4
      %s148 = scalar_lea.vmem %s0, %s147
      %p149 = pneg %p35
      %p150 = pneg %p32
      %p151 = pneg %p56
      %p152 = pneg %p53
      %p153 = pneg %p77
      %p154 = pneg %p74
      %p155 = pneg %p103
      %p156 = pneg %p100
      %s157 = smul.u32 32, %s14
      %p158 = scmp.lt.s32.totalorder %s157, 63
      %s159 = scalar_select %p158, %s157, 63
      %s160 = smul.addr %s159, 8
      %s161 = scalar_lea.vmem %s3, %s160
      %s162 = smul.u32 32, %s14
      %p163 = scmp.lt.s32.totalorder %s162, 63
      %s164 = scalar_select %p163, %s162, 63
      %s165 = smul.addr %s164, 4
      %s166 = scalar_lea.vmem %s0, %s165
      %s167 = smul.u32 32, %s14
      %s168 = smul.u32 32, %s14
      %p169 = scmp.lt.s32.totalorder %s168, 63
      %s170 = scalar_select %p169, %s168, 63
      %s171 = smul.addr %s170, 8
      %s172 = scalar_lea.vmem %s3, %s171
      %s173 = smul.u32 32, %s14
      %v175 = vld [vmem:[%s166] sm:$0xf]
      %v176 = vld [vmem:[%s166 + $0x4] sm:$0xf]
      %v177 = vld [vmem:[%s166 + $0x8] sm:$0xf]
      %v178 = vld [vmem:[%s166 + $0xc] sm:$0xf]
      %v179 = vld [vmem:[%s166 + $0x10] sm:$0xf]
      %v180 = vld [vmem:[%s166 + $0x14] sm:$0xf]
      %v181 = vld [vmem:[%s166 + $0x18] sm:$0xf]
      %v182 = vld [vmem:[%s166 + $0x1c] sm:$0xf]
      %v183 = vld [vmem:[%s166 + $0x20] sm:$0xf]
      %v184 = vld [vmem:[%s166 + $0x24] sm:$0xf]
      %v185 = vld [vmem:[%s166 + $0x28] sm:$0xf]
      %v186 = vld [vmem:[%s166 + $0x2c] sm:$0xf]
      %v187 = vld [vmem:[%s166 + $0x30] sm:$0xf]
      %v188 = vld [vmem:[%s166 + $0x34] sm:$0xf]
      %v189 = vld [vmem:[%s166 + $0x38] sm:$0xf]
      %v190 = vld [vmem:[%s166 + $0x3c] sm:$0xf]
      %v191 = vld [vmem:[%s166 + $0x40] sm:$0xf]
      %v192 = vld [vmem:[%s166 + $0x44] sm:$0xf]
      %v193 = vld [vmem:[%s166 + $0x48] sm:$0xf]
      %v194 = vld [vmem:[%s166 + $0x4c] sm:$0xf]
      %v195 = vld [vmem:[%s166 + $0x50] sm:$0xf]
      %v196 = vld [vmem:[%s166 + $0x54] sm:$0xf]
      %v197 = vld [vmem:[%s166 + $0x58] sm:$0xf]
      %v198 = vld [vmem:[%s166 + $0x5c] sm:$0xf]
      %v199 = vld [vmem:[%s166 + $0x60] sm:$0xf]
      %v200 = vld [vmem:[%s166 + $0x64] sm:$0xf]
      %v201 = vld [vmem:[%s166 + $0x68] sm:$0xf]
      %v202 = vld [vmem:[%s166 + $0x6c] sm:$0xf]
      %v203 = vld [vmem:[%s166 + $0x70] sm:$0xf]
      %v204 = vld [vmem:[%s166 + $0x74] sm:$0xf]
      %v205 = vld [vmem:[%s166 + $0x78] sm:$0xf]
      %v206 = vld [vmem:[%s166 + $0x7c] sm:$0xf]
      %v207 = vld [vmem:[%s1] sm:$0xf]
      %v208 = vld [vmem:[%s1 + $0x4] sm:$0xf]
      %v209 = vld [vmem:[%s1 + $0x8] sm:$0xf]
      %v210 = vld [vmem:[%s1 + $0xc] sm:$0xf]
      %v211 = vld [vmem:[%s1 + $0x10] sm:$0x3]
      %v212 = vld [vmem:[%s2] sm:$0x1]
      %v214 = vperm.slane %v212, 0
      %v248 = vunpack.c.l.b16 %v175
      %v249 = vunpack.c.l.b16 %v176
      %v250 = vunpack.c.l.b16 %v177
      %v251 = vunpack.c.l.b16 %v178
      %v252 = vunpack.c.l.b16 %v179
      %v253 = vunpack.c.l.b16 %v180
      %v254 = vunpack.c.l.b16 %v181
      %v255 = vunpack.c.l.b16 %v182
      %v256 = vunpack.c.l.b16 %v183
      %v257 = vunpack.c.l.b16 %v184
      %v258 = vunpack.c.l.b16 %v185
      %v259 = vunpack.c.l.b16 %v186
      %v260 = vunpack.c.l.b16 %v187
      %v261 = vunpack.c.l.b16 %v188
      %v262 = vunpack.c.l.b16 %v189
      %v263 = vunpack.c.l.b16 %v190
      %v264 = vunpack.c.l.b16 %v191
      %v265 = vunpack.c.l.b16 %v192
      %v266 = vunpack.c.l.b16 %v193
      %v267 = vunpack.c.l.b16 %v194
      %v268 = vunpack.c.l.b16 %v195
      %v269 = vunpack.c.l.b16 %v196
      %v270 = vunpack.c.l.b16 %v197
      %v271 = vunpack.c.l.b16 %v198
      %v272 = vunpack.c.l.b16 %v199
      %v273 = vunpack.c.l.b16 %v200
      %v274 = vunpack.c.l.b16 %v201
      %v275 = vunpack.c.l.b16 %v202
      %v276 = vunpack.c.l.b16 %v203
      %v277 = vunpack.c.l.b16 %v204
      %v278 = vunpack.c.l.b16 %v205
      %v279 = vunpack.c.l.b16 %v206
      %v280 = vpack.c.b16 %v249, %v248
      %v281 = vpack.c.b16 %v251, %v250
      %v282 = vpack.c.b16 %v253, %v252
      %v283 = vpack.c.b16 %v255, %v254
      %v284 = vpack.c.b16 %v257, %v256
      %v285 = vpack.c.b16 %v259, %v258
      %v286 = vpack.c.b16 %v261, %v260
      %v287 = vpack.c.b16 %v263, %v262
      %v288 = vpack.c.b16 %v265, %v264
      %v289 = vpack.c.b16 %v267, %v266
      %v290 = vpack.c.b16 %v269, %v268
      %v291 = vpack.c.b16 %v271, %v270
      %v292 = vpack.c.b16 %v273, %v272
      %v293 = vpack.c.b16 %v275, %v274
      %v294 = vpack.c.b16 %v277, %v276
      %v295 = vpack.c.b16 %v279, %v278
      %v301 = vunpack.c.l.b16 %v207
      %v302 = vunpack.c.l.b16 %v208
      %v303 = vunpack.c.l.b16 %v209
      %v304 = vunpack.c.l.b16 %v210
      %v305 = vunpack.c.l.b16 %v211
      %v306 = vpack.c.b16 %v302, %v301
      %v307 = vpack.c.b16 %v304, %v303
      %v308 = vpack.c.b16 %v305, %v305
      %vm311 = vcmask 293888
      %v313 = vsel %vm311, %v280, 0
      %v316 = vsel %vm311, %v281, 0
      %v319 = vsel %vm311, %v282, 0
      %v322 = vsel %vm311, %v283, 0
      %v325 = vsel %vm311, %v284, 0
      %v328 = vsel %vm311, %v285, 0
      %v331 = vsel %vm311, %v286, 0
      %v334 = vsel %vm311, %v287, 0
      %v337 = vsel %vm311, %v288, 0
      %v340 = vsel %vm311, %v289, 0
      %v343 = vsel %vm311, %v290, 0
      %v346 = vsel %vm311, %v291, 0
      %v349 = vsel %vm311, %v292, 0
      %v352 = vsel %vm311, %v293, 0
      %v355 = vsel %vm311, %v294, 0
      %v358 = vsel %vm311, %v295, 0
      %vm360 = vcmask 1041408
      %v362 = vsel %vm360, %v308, 0
      %364 = vmatpush.bf16.msra.mxu0 0
      %365 = vmatpush.bf16.msra.mxu0 0
      %366 = vmatpush.bf16.msra.mxu0 0
      %367 = vmatpush.bf16.msra.mxu0 0
      %368 = vmatpush.bf16.msra.mxu0 0
      %369 = vmatpush.bf16.msra.mxu0 %v362
      %370 = vmatpush.bf16.msra.mxu0 %v307
      %371 = vmatpush.bf16.msra.mxu0 %v306
      %372 = vmatmul.bf16.gmra.mxu0 %v313
      %v373 = vpop.f32.mrf.mxu0
      %v374 = vadd.f32 %v214, %v373
      %v375 = vpop.f32.mrf.mxu0
      %v376 = vadd.f32 %v214, %v375
      %377 = vmatmul.bf16.gmra.mxu0 %v316
      %v378 = vpop.f32.mrf.mxu0
      %v379 = vadd.f32 %v214, %v378
      %v380 = vpop.f32.mrf.mxu0
      %v381 = vadd.f32 %v214, %v380
      %382 = vmatmul.bf16.gmra.mxu0 %v319
      %v383 = vpop.f32.mrf.mxu0
      %v384 = vadd.f32 %v214, %v383
      %v385 = vpop.f32.mrf.mxu0
      %v386 = vadd.f32 %v214, %v385
      %387 = vmatmul.bf16.gmra.mxu0 %v322
      %v388 = vpop.f32.mrf.mxu0
      %v389 = vadd.f32 %v214, %v388
      %v390 = vpop.f32.mrf.mxu0
      %v391 = vadd.f32 %v214, %v390
      %392 = vmatmul.bf16.gmra.mxu0 %v325
      %v393 = vpop.f32.mrf.mxu0
      %v394 = vadd.f32 %v214, %v393
      %v395 = vpop.f32.mrf.mxu0
      %v396 = vadd.f32 %v214, %v395
      %397 = vmatmul.bf16.gmra.mxu0 %v328
      %v398 = vpop.f32.mrf.mxu0
      %v399 = vadd.f32 %v214, %v398
      %v400 = vpop.f32.mrf.mxu0
      %v401 = vadd.f32 %v214, %v400
      %402 = vmatmul.bf16.gmra.mxu0 %v331
      %v403 = vpop.f32.mrf.mxu0
      %v404 = vadd.f32 %v214, %v403
      %v405 = vpop.f32.mrf.mxu0
      %v406 = vadd.f32 %v214, %v405
      %407 = vmatmul.bf16.gmra.mxu0 %v334
      %v408 = vpop.f32.mrf.mxu0
      %v409 = vadd.f32 %v214, %v408
      %v410 = vpop.f32.mrf.mxu0
      %v411 = vadd.f32 %v214, %v410
      %412 = vmatmul.bf16.gmra.mxu0 %v337
      %v413 = vpop.f32.mrf.mxu0
      %v414 = vadd.f32 %v214, %v413
      %v415 = vpop.f32.mrf.mxu0
      %v416 = vadd.f32 %v214, %v415
      %417 = vmatmul.bf16.gmra.mxu0 %v340
      %v418 = vpop.f32.mrf.mxu0
      %v419 = vadd.f32 %v214, %v418
      %v420 = vpop.f32.mrf.mxu0
      %v421 = vadd.f32 %v214, %v420
      %422 = vmatmul.bf16.gmra.mxu0 %v343
      %v423 = vpop.f32.mrf.mxu0
      %v424 = vadd.f32 %v214, %v423
      %v425 = vpop.f32.mrf.mxu0
      %v426 = vadd.f32 %v214, %v425
      %427 = vmatmul.bf16.gmra.mxu0 %v346
      %v428 = vpop.f32.mrf.mxu0
      %v429 = vadd.f32 %v214, %v428
      %v430 = vpop.f32.mrf.mxu0
      %v431 = vadd.f32 %v214, %v430
      %432 = vmatmul.bf16.gmra.mxu0 %v349
      %v433 = vpop.f32.mrf.mxu0
      %v434 = vadd.f32 %v214, %v433
      %v435 = vpop.f32.mrf.mxu0
      %v436 = vadd.f32 %v214, %v435
      %437 = vmatmul.bf16.gmra.mxu0 %v352
      %v438 = vpop.f32.mrf.mxu0
      %v439 = vadd.f32 %v214, %v438
      %v440 = vpop.f32.mrf.mxu0
      %v441 = vadd.f32 %v214, %v440
      %442 = vmatmul.bf16.gmra.mxu0 %v355
      %v443 = vpop.f32.mrf.mxu0
      %v444 = vadd.f32 %v214, %v443
      %v445 = vpop.f32.mrf.mxu0
      %v446 = vadd.f32 %v214, %v445
      %447 = vmatmul.bf16.gmra.mxu0 %v358
      %v448 = vpop.f32.mrf.mxu0
      %v449 = vadd.f32 %v214, %v448
      %v450 = vpop.f32.mrf.mxu0
      %v451 = vadd.f32 %v214, %v450
      %452 = vdwg.mxu0
      %453 = vst [vmem:[%s172] sm:$0xff] %v374
      %454 = vst [vmem:[%s172 + $0x8] sm:$0xff] %v376
      %455 = vst [vmem:[%s172 + $0x10] sm:$0xff] %v379
      %456 = vst [vmem:[%s172 + $0x18] sm:$0xff] %v381
      %457 = vst [vmem:[%s172 + $0x20] sm:$0xff] %v384
      %458 = vst [vmem:[%s172 + $0x28] sm:$0xff] %v386
      %459 = vst [vmem:[%s172 + $0x30] sm:$0xff] %v389
      %460 = vst [vmem:[%s172 + $0x38] sm:$0xff] %v391
      %461 = vst [vmem:[%s172 + $0x40] sm:$0xff] %v394
      %462 = vst [vmem:[%s172 + $0x48] sm:$0xff] %v396
      %463 = vst [vmem:[%s172 + $0x50] sm:$0xff] %v399
      %464 = vst [vmem:[%s172 + $0x58] sm:$0xff] %v401
      %465 = vst [vmem:[%s172 + $0x60] sm:$0xff] %v404
      %466 = vst [vmem:[%s172 + $0x68] sm:$0xff] %v406
      %467 = vst [vmem:[%s172 + $0x70] sm:$0xff] %v409
      %468 = vst [vmem:[%s172 + $0x78] sm:$0xff] %v411
      %469 = vst [vmem:[%s172 + $0x80] sm:$0xff] %v414
      %470 = vst [vmem:[%s172 + $0x88] sm:$0xff] %v416
      %471 = vst [vmem:[%s172 + $0x90] sm:$0xff] %v419
      %472 = vst [vmem:[%s172 + $0x98] sm:$0xff] %v421
      %473 = vst [vmem:[%s172 + $0xa0] sm:$0xff] %v424
      %474 = vst [vmem:[%s172 + $0xa8] sm:$0xff] %v426
      %475 = vst [vmem:[%s172 + $0xb0] sm:$0xff] %v429
      %476 = vst [vmem:[%s172 + $0xb8] sm:$0xff] %v431
      %477 = vst [vmem:[%s172 + $0xc0] sm:$0xff] %v434
      %478 = vst [vmem:[%s172 + $0xc8] sm:$0xff] %v436
      %479 = vst [vmem:[%s172 + $0xd0] sm:$0xff] %v439
      %480 = vst [vmem:[%s172 + $0xd8] sm:$0xff] %v441
      %481 = vst [vmem:[%s172 + $0xe0] sm:$0xff] %v444
      %482 = vst [vmem:[%s172 + $0xe8] sm:$0xff] %v446
      %483 = vst [vmem:[%s172 + $0xf0] sm:$0xff] %v449
      %484 = vst [vmem:[%s172 + $0xf8] sm:$0xff] %v451
      %s485 = smul.u32 32, %s14
      %p486 = scmp.lt.s32.totalorder %s485, 63
      %s487 = scalar_select %p486, %s485, 63
      %s488 = smul.addr %s487, 8
      %s489 = scalar_lea.vmem %s3, %s488
      // Predicated region
      $region33: #{spectral_norm_conv2d.3} parent=31 // pred_check
        %p490 = pneg %p100
      $region34: #{spectral_norm_conv2d.3} parent=31 // pred_check_branch
        %492 = sbr.rel (%p490) target = $region36
      $region35: #{spectral_norm_conv2d.3} parent=31 // pred_region
        %s493 = smul.u32 32, %s14
      $region36: #{spectral_norm_conv2d.3} parent=31 // pred_fallthru
        _
    $region32: #{spectral_norm_conv2d.3} parent=5 // pred_fallthru
      _
    %p494 = scmp.le.s32.totalorder 2, %s9
    // Predicated region
    $region37: #{spectral_norm_conv2d.3} parent=5 // pred_check
      %p495 = pneg %p494
    $region38: #{spectral_norm_conv2d.3} parent=5 // pred_check_branch
      %497 = sbr.rel (%p495) target = $region40
    $region39: #{spectral_norm_conv2d.3} parent=5 // pred_region
      %s498 = ssub.s32 %s9, 2
      // Predicated region
      $region41: #{spectral_norm_conv2d.3} parent=39 // pred_check
        %p499 = pneg %p106
      $region42: #{spectral_norm_conv2d.3} parent=39 // pred_check_branch
        %501 = sbr.rel (%p499) target = $region44
      $region43: #{spectral_norm_conv2d.3} parent=39 // pred_region
        %s502 = smul.u32 32, %s15
        %p503 = scmp.lt.s32.totalorder %s502, 63
        %s504 = scalar_select %p503, %s502, 63
        %s505 = smul.addr %s504, 8
        %s506 = scalar_lea.vmem %s3, %s505
      $region44: #{spectral_norm_conv2d.3} parent=39 // pred_fallthru
        _
    $region40: #{spectral_norm_conv2d.3} parent=5 // pred_fallthru
      _
  $region6: #{spectral_norm_conv2d.3} parent=0 // loop_footer
    %s13 = sadd.s32 1, %s9
  $region7: #{spectral_norm_conv2d.3} parent=0 // loop_footer_branch
    %8 = sbr.rel target = $region3
  $region8: #{spectral_norm_conv2d.3} parent=0 // loop_exit
    _

</llo_original>
